<compile_context>
chip_gen: v7x
topology: tpu7x:2x2x1
jax: 0.10.0
libtpu: 0.0.40
codegen_flags: <defaults>
</compile_context>

<pallas_src>
import functools

import jax
import jax.numpy as jnp
import numpy as np
from jax.experimental import pallas as pl
from jax.experimental.pallas import tpu as pltpu

_LANE = 128


def _mlp_kernel(n_layers, obs_ref, act_ref, *refs):
    """refs = (w1_obs_t, w1_act_t, b1, w2_t, b2, ..., wL_t, bL, out_ref).

    Batch-on-lanes layout:
      obs_ref: (obs_dim, bt)   act_ref: (act_dim, bt)
      wj_t:    (out_j, in_j)   bj:      (out_j, 1)
      out_ref: (1, bt)
    Layer 1 is the split form of  concat([obs, act]) @ W1 + b1  (no concat needed);
    hidden layers use ReLU; the last layer is linear (Identity output activation).
    """
    out_ref = refs[-1]
    w_refs = refs[:-1]

    # Layer 1:  h = W1_obs^T @ obs_t + W1_act^T @ act_t + b1   -> (h1, bt), f32 acc.
    h = (
        jnp.dot(w_refs[0][...], obs_ref[...], preferred_element_type=jnp.float32)
        + jnp.dot(w_refs[1][...], act_ref[...], preferred_element_type=jnp.float32)
        + w_refs[2][...].astype(jnp.float32)
    )
    if n_layers > 1:
        h = jnp.maximum(h, 0.0)  # hidden activation = ReLU (kept in f32)

    idx = 3
    for j in range(1, n_layers):
        w = w_refs[idx][...]
        b = w_refs[idx + 1][...]
        idx += 2
        # Cast activation to the weight dtype (no-op for f32; bf16 MXU path for bf16
        # params); accumulate in f32 via preferred_element_type.
        h = jnp.dot(w, h.astype(w.dtype), preferred_element_type=jnp.float32)
        h = h + b.astype(jnp.float32)
        if j < n_layers - 1:
            h = jnp.maximum(h, 0.0)
        # last layer: identity (output_activation = Identity)

    out_ref[...] = h.astype(out_ref.dtype)


def _choose_batch_tile(B, batch_tile):
    """Pick the lane-width of each batch tile."""
    batch_tile = max(_LANE, _LANE * ((batch_tile + _LANE - 1) // _LANE))
    if B <= _LANE:
        return B  # single tile; block == full array dims (no (8,128) constraint)
    if B <= 2 * batch_tile:
        # Aim for exactly 2 grid steps (v7x: both TensorCores get one) with a
        # 128-multiple lane width.
        return _LANE * pl.cdiv(pl.cdiv(B, 2), _LANE)
    return batch_tile  # large batches: big tiles amortize per-step overhead


def action_value_forward(obs, act, params, *, batch_tile=512):
    """obs: (B, obs_dim), act: (B, act_dim).
    params: list of (W_(in,out), b_(1,out)); W1 has in = obs_dim + act_dim.
    Returns q: (B,) float32."""
    B, obs_dim = obs.shape
    B2, act_dim = act.shape
    assert B2 == B, "obs and act must share the batch dimension"
    n_layers = len(params)

    # --- trace-time parameter prep: split W1 (replaces the runtime concat) and
    # transpose everything so the batch maps to the lane axis inside the kernel. ---
    w1, b1 = params[0]
    flat_params = [
        jnp.transpose(w1[:obs_dim, :]),   # (h1, obs_dim)
        jnp.transpose(w1[obs_dim:, :]),   # (h1, act_dim)
        jnp.reshape(b1, (-1, 1)),         # (h1, 1)
    ]
    for (w, b) in params[1:]:
        flat_params += [jnp.transpose(w), jnp.reshape(b, (-1, 1))]

    # Batch on the lane axis (lane-dense input DMA + lane-dense output stores).
    # Callers that can store obs/act feature-major avoid even this cheap transpose.
    obs_t = jnp.transpose(obs)  # (obs_dim, B)
    act_t = jnp.transpose(act)  # (act_dim, B)

    bt = _choose_batch_tile(B, batch_tile)
    grid = (pl.cdiv(B, bt),)    # no padding: Pallas clips the partial last block

    in_specs = [
        pl.BlockSpec((obs_dim, bt), lambda i: (0, i)),
        pl.BlockSpec((act_dim, bt), lambda i: (0, i)),
    ]
    for p in flat_params:
        # Replicated per batch tile (constant index map -> no re-DMA across steps).
        in_specs.append(pl.BlockSpec(p.shape, lambda i: (0, 0)))

    # Advisory cost: this kernel is tiny; tell XLA so it schedules it cheaply.
    in_itemsize = jnp.dtype(obs.dtype).itemsize
    flops = sum(2 * B * w.shape[0] * w.shape[1] for (w, _) in params)
    bytes_accessed = int(
        B * (obs_dim + act_dim) * in_itemsize
        + sum(int(np.prod(p.shape)) * jnp.dtype(p.dtype).itemsize
              for p in flat_params)
        + B * 4
    )
    cost = pl.CostEstimate(flops=flops, transcendentals=0,
                           bytes_accessed=bytes_accessed)

    q = pl.pallas_call(
        functools.partial(_mlp_kernel, n_layers),
        out_shape=jax.ShapeDtypeStruct((1, B), jnp.float32),
        grid=grid,
        in_specs=in_specs,
        out_specs=pl.BlockSpec((1, bt), lambda i: (0, i)),
        compiler_params=pltpu.CompilerParams(
            dimension_semantics=("parallel",)),
        cost_estimate=cost,
    )(obs_t, act_t, *flat_params)

    return q[0]  # (B,) -- lane-dense output; no pad/slice/squeeze HBM round-trips


def init_params(key, sizes):
    """Re-implementation of init_weights(): W ~ U(-w_bound, w_bound) with
    w_bound = sqrt(6/(fan_in+fan_out)); biases = 0. Weights stored as (in, out)."""
    params = []
    for j in range(len(sizes) - 1):
        fan_in, fan_out = sizes[j], sizes[j + 1]
        w_bound = np.sqrt(6.0 / (fan_in + fan_out))
        key, sub = jax.random.split(key)
        w = jax.random.uniform(sub, (fan_in, fan_out), jnp.float32,
                               minval=-w_bound, maxval=w_bound)
        b = jnp.zeros((1, fan_out), jnp.float32)
        params.append((w, b))
    return params


def reference_forward(obs, act, params):
    h = jnp.concatenate([obs, act], axis=-1)
    n = len(params)
    for j, (w, b) in enumerate(params):
        h = h @ w + b
        if j < n - 1:
            h = jnp.maximum(h, 0.0)
    return jnp.squeeze(h, axis=-1)


if __name__ == "__main__":
    obs_dim = 4
    act_dim = 2
    hidden_sizes = (32, 32)
    sizes = [obs_dim + act_dim] + list(hidden_sizes) + [1]

    key = jax.random.PRNGKey(0)
    k_obs, k_act, k_par, k_obs2, k_act2 = jax.random.split(key, 5)
    params = init_params(k_par, sizes)

    # Case 1: small batch -> single tile, block == full array dims.
    batch = 16
    obs = jax.random.normal(k_obs, (batch, obs_dim), jnp.float32)
    act = jax.random.normal(k_act, (batch, act_dim), jnp.float32)
    q = jax.block_until_ready(action_value_forward(obs, act, params))
    q_ref = reference_forward(obs, act, params)
    assert q.shape == (batch,)
    np.testing.assert_allclose(np.asarray(q), np.asarray(q_ref), rtol=1e-5, atol=1e-5)

    # Case 2: non-128-multiple batch -> two 256-lane tiles, partial last block
    # handled by Pallas (no host-side padding); 'parallel' axis has >=2 tiles
    # so both v7x TensorCores are used.
    batch2 = 300
    obs2 = jax.random.normal(k_obs2, (batch2, obs_dim), jnp.float32)
    act2 = jax.random.normal(k_act2, (batch2, act_dim), jnp.float32)
    q2 = jax.block_until_ready(action_value_forward(obs2, act2, params))
    q2_ref = reference_forward(obs2, act2, params)
    assert q2.shape == (batch2,)
    np.testing.assert_allclose(np.asarray(q2), np.asarray(q2_ref), rtol=1e-5, atol=1e-5)

    # Case 3: bf16 inputs + params (halves HBM traffic for this mem-bound kernel);
    # f32 accumulation inside -> loose tolerance vs the f32 reference.
    params_bf16 = [(w.astype(jnp.bfloat16), b.astype(jnp.bfloat16))
                   for (w, b) in params]
    q3 = jax.block_until_ready(
        action_value_forward(obs2.astype(jnp.bfloat16),
                             act2.astype(jnp.bfloat16), params_bf16))
    assert q3.shape == (batch2,)
    np.testing.assert_allclose(np.asarray(q3), np.asarray(q2_ref), rtol=5e-2, atol=5e-2)

    print("KERNEL_OK")
</pallas_src>

<mosaic_0001>
module attributes {stable_mosaic.version = 11 : i64} {
  func.func @_mlp_kernel(%arg0: i32, %arg1: memref<4x16xf32, #tpu.memory_space<vmem>>, %arg2: memref<2x16xf32, #tpu.memory_space<vmem>>, %arg3: memref<32x4xf32, #tpu.memory_space<vmem>>, %arg4: memref<32x2xf32, #tpu.memory_space<vmem>>, %arg5: memref<32x1xf32, #tpu.memory_space<vmem>>, %arg6: memref<32x32xf32, #tpu.memory_space<vmem>>, %arg7: memref<32x1xf32, #tpu.memory_space<vmem>>, %arg8: memref<1x32xf32, #tpu.memory_space<vmem>>, %arg9: memref<1x1xf32, #tpu.memory_space<vmem>>, %arg10: memref<1x16xf32, #tpu.memory_space<vmem>>) attributes {dimension_semantics = [#tpu.dimension_semantics<parallel>], iteration_bounds = array<i64: 1>, scalar_prefetch = 0 : i64, scratch_operands = 0 : i64, tpu.core_type = #tpu.core_type<tc>, window_params = [{transform_indices = @transform_0, window_bounds = array<i64: 4, 16>}, {transform_indices = @transform_1, window_bounds = array<i64: 2, 16>}, {pipeline_mode = #tpu.pipeline_mode<synchronous>, transform_indices = @transform_2, window_bounds = array<i64: 32, 4>}, {pipeline_mode = #tpu.pipeline_mode<synchronous>, transform_indices = @transform_3, window_bounds = array<i64: 32, 2>}, {pipeline_mode = #tpu.pipeline_mode<synchronous>, transform_indices = @transform_4, window_bounds = array<i64: 32, 1>}, {pipeline_mode = #tpu.pipeline_mode<synchronous>, transform_indices = @transform_5, window_bounds = array<i64: 32, 32>}, {pipeline_mode = #tpu.pipeline_mode<synchronous>, transform_indices = @transform_6, window_bounds = array<i64: 32, 1>}, {pipeline_mode = #tpu.pipeline_mode<synchronous>, transform_indices = @transform_7, window_bounds = array<i64: 1, 32>}, {pipeline_mode = #tpu.pipeline_mode<synchronous>, transform_indices = @transform_8, window_bounds = array<i64: 1, 1>}, {transform_indices = @transform_9, window_bounds = array<i64: 1, 16>}]} {
    %c0 = arith.constant 0 : index
    %c0_0 = arith.constant 0 : index
    %0 = vector.load %arg3[%c0, %c0_0] : memref<32x4xf32, #tpu.memory_space<vmem>>, vector<32x4xf32>
    %c0_1 = arith.constant 0 : index
    %c0_2 = arith.constant 0 : index
    %1 = vector.load %arg1[%c0_1, %c0_2] : memref<4x16xf32, #tpu.memory_space<vmem>>, vector<4x16xf32>
    %cst = arith.constant dense<0.000000e+00> : vector<32x16xf32>
    %2 = tpu.matmul %0, %1, %cst {dimension_numbers = #tpu.dot_dimension_numbers<[1], [0], [0], [1], [0, 0, 1, 1], [], []>} : vector<32x4xf32>, vector<4x16xf32>, vector<32x16xf32> -> vector<32x16xf32>
    %c0_3 = arith.constant 0 : index
    %c0_4 = arith.constant 0 : index
    %3 = vector.load %arg4[%c0_3, %c0_4] : memref<32x2xf32, #tpu.memory_space<vmem>>, vector<32x2xf32>
    %c0_5 = arith.constant 0 : index
    %c0_6 = arith.constant 0 : index
    %4 = vector.load %arg2[%c0_5, %c0_6] : memref<2x16xf32, #tpu.memory_space<vmem>>, vector<2x16xf32>
    %cst_7 = arith.constant dense<0.000000e+00> : vector<32x16xf32>
    %5 = tpu.matmul %3, %4, %cst_7 {dimension_numbers = #tpu.dot_dimension_numbers<[1], [0], [0], [1], [0, 0, 1, 1], [], []>} : vector<32x2xf32>, vector<2x16xf32>, vector<32x16xf32> -> vector<32x16xf32>
    %6 = arith.addf %2, %5 : vector<32x16xf32>
    %c0_8 = arith.constant 0 : index
    %c0_9 = arith.constant 0 : index
    %7 = vector.load %arg5[%c0_8, %c0_9] : memref<32x1xf32, #tpu.memory_space<vmem>>, vector<32x1xf32>
    %8 = vector.broadcast %7 : vector<32x1xf32> to vector<32x16xf32>
    %9 = arith.addf %6, %8 : vector<32x16xf32>
    %cst_10 = arith.constant 0.000000e+00 : f32
    %10 = vector.broadcast %cst_10 : f32 to vector<32x16xf32>
    %11 = arith.maximumf %9, %10 : vector<32x16xf32>
    %c0_11 = arith.constant 0 : index
    %c0_12 = arith.constant 0 : index
    %12 = vector.load %arg6[%c0_11, %c0_12] : memref<32x32xf32, #tpu.memory_space<vmem>>, vector<32x32xf32>
    %c0_13 = arith.constant 0 : index
    %c0_14 = arith.constant 0 : index
    %13 = vector.load %arg7[%c0_13, %c0_14] : memref<32x1xf32, #tpu.memory_space<vmem>>, vector<32x1xf32>
    %cst_15 = arith.constant dense<0.000000e+00> : vector<32x16xf32>
    %14 = tpu.matmul %12, %11, %cst_15 {dimension_numbers = #tpu.dot_dimension_numbers<[1], [0], [0], [1], [0, 0, 1, 1], [], []>} : vector<32x32xf32>, vector<32x16xf32>, vector<32x16xf32> -> vector<32x16xf32>
    %15 = vector.broadcast %13 : vector<32x1xf32> to vector<32x16xf32>
    %16 = arith.addf %14, %15 : vector<32x16xf32>
    %cst_16 = arith.constant 0.000000e+00 : f32
    %17 = vector.broadcast %cst_16 : f32 to vector<32x16xf32>
    %18 = arith.maximumf %16, %17 : vector<32x16xf32>
    %c0_17 = arith.constant 0 : index
    %c0_18 = arith.constant 0 : index
    %19 = vector.load %arg8[%c0_17, %c0_18] : memref<1x32xf32, #tpu.memory_space<vmem>>, vector<1x32xf32>
    %c0_19 = arith.constant 0 : index
    %c0_20 = arith.constant 0 : index
    %20 = vector.load %arg9[%c0_19, %c0_20] : memref<1x1xf32, #tpu.memory_space<vmem>>, vector<1x1xf32>
    %cst_21 = arith.constant dense<0.000000e+00> : vector<1x16xf32>
    %21 = tpu.matmul %19, %18, %cst_21 {dimension_numbers = #tpu.dot_dimension_numbers<[1], [0], [0], [1], [0, 0, 1, 1], [], []>} : vector<1x32xf32>, vector<32x16xf32>, vector<1x16xf32> -> vector<1x16xf32>
    %22 = vector.broadcast %20 : vector<1x1xf32> to vector<1x16xf32>
    %23 = arith.addf %21, %22 : vector<1x16xf32>
    %c0_22 = arith.constant 0 : index
    %c0_23 = arith.constant 0 : index
    %24 = vector.load %arg10[%c0_22, %c0_23] : memref<1x16xf32, #tpu.memory_space<vmem>>, vector<1x16xf32>
    tpu.vector_store %arg10[%c0_22, %c0_23], %23 {strides = array<i32>} : memref<1x16xf32, #tpu.memory_space<vmem>>, vector<1x16xf32>,
    return
  }
  func.func @transform_0(%arg0: i32) -> (i32, i32) {
    %c0_i32 = arith.constant 0 : i32
    %c0_i32_0 = arith.constant 0 : i32
    return %c0_i32, %arg0 : i32, i32
  }
  func.func @transform_1(%arg0: i32) -> (i32, i32) {
    %c0_i32 = arith.constant 0 : i32
    %c0_i32_0 = arith.constant 0 : i32
    return %c0_i32, %arg0 : i32, i32
  }
  func.func @transform_2(%arg0: i32) -> (i32, i32) {
    %c0_i32 = arith.constant 0 : i32
    %c0_i32_0 = arith.constant 0 : i32
    %c0_i32_1 = arith.constant 0 : i32
    return %c0_i32, %c0_i32_0 : i32, i32
  }
  func.func @transform_3(%arg0: i32) -> (i32, i32) {
    %c0_i32 = arith.constant 0 : i32
    %c0_i32_0 = arith.constant 0 : i32
    %c0_i32_1 = arith.constant 0 : i32
    return %c0_i32, %c0_i32_0 : i32, i32
  }
  func.func @transform_4(%arg0: i32) -> (i32, i32) {
    %c0_i32 = arith.constant 0 : i32
    %c0_i32_0 = arith.constant 0 : i32
    %c0_i32_1 = arith.constant 0 : i32
    return %c0_i32, %c0_i32_0 : i32, i32
  }
  func.func @transform_5(%arg0: i32) -> (i32, i32) {
    %c0_i32 = arith.constant 0 : i32
    %c0_i32_0 = arith.constant 0 : i32
    %c0_i32_1 = arith.constant 0 : i32
    return %c0_i32, %c0_i32_0 : i32, i32
  }
  func.func @transform_6(%arg0: i32) -> (i32, i32) {
    %c0_i32 = arith.constant 0 : i32
    %c0_i32_0 = arith.constant 0 : i32
    %c0_i32_1 = arith.constant 0 : i32
    return %c0_i32, %c0_i32_0 : i32, i32
  }
  func.func @transform_7(%arg0: i32) -> (i32, i32) {
    %c0_i32 = arith.constant 0 : i32
    %c0_i32_0 = arith.constant 0 : i32
    %c0_i32_1 = arith.constant 0 : i32
    return %c0_i32, %c0_i32_0 : i32, i32
  }
  func.func @transform_8(%arg0: i32) -> (i32, i32) {
    %c0_i32 = arith.constant 0 : i32
    %c0_i32_0 = arith.constant 0 : i32
    %c0_i32_1 = arith.constant 0 : i32
    return %c0_i32, %c0_i32_0 : i32, i32
  }
  func.func @transform_9(%arg0: i32) -> (i32, i32) {
    %c0_i32 = arith.constant 0 : i32
    %c0_i32_0 = arith.constant 0 : i32
    return %c0_i32, %arg0 : i32, i32
  }
}

</mosaic_0001>

<llo_original>
// kernel: tpu_custom_call.1
$region0: #{tpu_custom_call.1}
  #allocation0 [shape = 'u32[]', space=smem, size = 0x4, offset = 0x4, fixed_abs, tag = 'smem constant byte address 0x4 - core index']
  #allocation1 [shape = 'u32[144,128]{1,0:T(1,128)}', space=vmem, size = 0x12000, scoped, tag = 'internal scratch']
  #allocation2 [shape = 'f32[1,1]{1,0:T(1,128)S(1)}', space=vmem, size = 0x200, scoped, tag = 'scoped memory for tpu_custom_call.1']
  %s0 = inlined_call_operand.vmem [shape: f32[4,16], index: 0, kind: input, shape index: {}]
  %s1 = inlined_call_operand.vmem [shape: f32[2,16], index: 1, kind: input, shape index: {}]
  %s2 = inlined_call_operand.vmem [shape: f32[32,4], index: 2, kind: input, shape index: {}]
  %s3 = inlined_call_operand.vmem [shape: f32[32,2], index: 3, kind: input, shape index: {}]
  %s4 = inlined_call_operand.vmem [shape: f32[32,1], index: 4, kind: input, shape index: {}]
  %s5 = inlined_call_operand.vmem [shape: f32[32,32], index: 5, kind: input, shape index: {}]
  %s6 = inlined_call_operand.vmem [shape: f32[32,1], index: 6, kind: input, shape index: {}]
  %s7 = inlined_call_operand.vmem [shape: f32[1,32], index: 7, kind: input, shape index: {}]
  %s8 = inlined_call_operand.<no memory space> [shape: f32[1,1], index: 8, kind: input, shape index: {}]
  %s9 = inlined_call_operand.hbm [shape: f32[1,16], index: 9, kind: output, shape index: {}]
  %s10 = sld [smem:[#allocation0]]
  $region46: #{tpu_custom_call.1} parent=0
    _
  %s12 = ssub.s32 1, %s10
  %s13 = scalar_select 0, %s12, %s10
  %v14 = vstv %s8
  %15 = vst [vmem:[#allocation2] sm:$0x1] %v14
  $region1: #{tpu_custom_call.1} parent=0
    #allocation3 [shape = 'u8[512]{0}', space=vmem, size = 0x400, scoped, tag = 'output window, operand 0, single buffered']
    #allocation4 [shape = 's32[1]{0}', space=sflag, size = 0x4, scoped, tag = 'scoped memory for tpu_custom_call.1']
    %16 = vsyncpa [#allocation4], 0
    // Predicated region
    $region2: #{tpu_custom_call.1} parent=1 // pred_check
      _
    $region3: #{tpu_custom_call.1} parent=1 // pred_check_branch
      %18 = sbr.rel (0) target = $region5
    $region4: #{tpu_custom_call.1} parent=1 // pred_region
      _
    $region5: #{tpu_custom_call.1} parent=1 // pred_fallthru
      _
    // Predicated region
    $region6: #{tpu_custom_call.1} parent=1 // pred_check
      _
    $region7: #{tpu_custom_call.1} parent=1 // pred_check_branch
      %20 = sbr.rel (0) target = $region9
    $region8: #{tpu_custom_call.1} parent=1 // pred_region
      _
    $region9: #{tpu_custom_call.1} parent=1 // pred_fallthru
      _
    // Predicated region
    $region10: #{tpu_custom_call.1} parent=1 // pred_check
      _
    $region11: #{tpu_custom_call.1} parent=1 // pred_check_branch
      %22 = sbr.rel (0) target = $region13
    $region12: #{tpu_custom_call.1} parent=1 // pred_region
      _
    $region13: #{tpu_custom_call.1} parent=1 // pred_fallthru
      _
    // Predicated region
    $region14: #{tpu_custom_call.1} parent=1 // pred_check
      _
    $region15: #{tpu_custom_call.1} parent=1 // pred_check_branch
      %24 = sbr.rel (0) target = $region17
    $region16: #{tpu_custom_call.1} parent=1 // pred_region
      _
    $region17: #{tpu_custom_call.1} parent=1 // pred_fallthru
      _
    // Predicated region
    $region18: #{tpu_custom_call.1} parent=1 // pred_check
      _
    $region19: #{tpu_custom_call.1} parent=1 // pred_check_branch
      %26 = sbr.rel (0) target = $region21
    $region20: #{tpu_custom_call.1} parent=1 // pred_region
      _
    $region21: #{tpu_custom_call.1} parent=1 // pred_fallthru
      _
    // Predicated region
    $region22: #{tpu_custom_call.1} parent=1 // pred_check
      _
    $region23: #{tpu_custom_call.1} parent=1 // pred_check_branch
      %28 = sbr.rel (0) target = $region25
    $region24: #{tpu_custom_call.1} parent=1 // pred_region
      _
    $region25: #{tpu_custom_call.1} parent=1 // pred_fallthru
      _
    // Predicated region
    $region26: #{tpu_custom_call.1} parent=1 // pred_check
      _
    $region27: #{tpu_custom_call.1} parent=1 // pred_check_branch
      %30 = sbr.rel (0) target = $region29
    $region28: #{tpu_custom_call.1} parent=1 // pred_region
      _
    $region29: #{tpu_custom_call.1} parent=1 // pred_fallthru
      _
    // Predicated region
    $region30: #{tpu_custom_call.1} parent=1 // pred_check
      _
    $region31: #{tpu_custom_call.1} parent=1 // pred_check_branch
      %32 = sbr.rel (0) target = $region33
    $region32: #{tpu_custom_call.1} parent=1 // pred_region
      _
    $region33: #{tpu_custom_call.1} parent=1 // pred_fallthru
      _
    // Predicated region
    $region34: #{tpu_custom_call.1} parent=1 // pred_check
      _
    $region35: #{tpu_custom_call.1} parent=1 // pred_check_branch
      %34 = sbr.rel (0) target = $region37
    $region36: #{tpu_custom_call.1} parent=1 // pred_region
      _
    $region37: #{tpu_custom_call.1} parent=1 // pred_fallthru
      _
    %v35 = vld [vmem:[%s2] sm:$0xff]
    %v36 = vld [vmem:[%s2 + $0x8] sm:$0xff]
    %v37 = vld [vmem:[%s2 + $0x10] sm:$0xff]
    %v38 = vld [vmem:[%s2 + $0x18] sm:$0xff]
    %v39 = vld [vmem:[%s0] sm:$0xf]
    %v40 = vld [vmem:[%s3] sm:$0xff]
    %v41 = vld [vmem:[%s3 + $0x8] sm:$0xff]
    %v42 = vld [vmem:[%s3 + $0x10] sm:$0xff]
    %v43 = vld [vmem:[%s3 + $0x18] sm:$0xff]
    %v44 = vld [vmem:[%s1] sm:$0x3]
    %vm45 = vcmask 15360
    %v47 = vsel %vm45, %v40, 0
    %v50 = vsel %vm45, %v41, 0
    %v53 = vsel %vm45, %v42, 0
    %v56 = vsel %vm45, %v43, 0
    %vm58 = vcmask 1041408
    %v60 = vsel %vm58, %v44, 0
    %62 = vmatprep.subr.mxu0 0.0
    %63 = vmatpush1.msra.mxu0 %v60
    %64 = vmatprep.subr.mxu0 0.0
    %65 = vmatpush1.msra.mxu0 0.0
    %66 = vmatprep.subr.mxu0 0.0
    %67 = vmatpush1.msra.mxu0 0.0
    %68 = vmatprep.subr.mxu0 0.0
    %69 = vmatpush1.msra.mxu0 0.0
    %70 = vmatprep.subr.mxu0 0.0
    %71 = vmatpush1.msra.mxu0 0.0
    %72 = vmatprep.subr.mxu0 0.0
    %73 = vmatpush1.msra.mxu0 0.0
    %74 = vmatprep.subr.mxu0 0.0
    %75 = vmatpush1.msra.mxu0 0.0
    %76 = vmatprep.subr.mxu0 0.0
    %77 = vmatpush1.msra.mxu0 0.0
    %78 = vmatprep.subr.mxu0 0.0
    %79 = vmatpush1.msra.mxu0 0.0
    %80 = vmatprep.subr.mxu0 0.0
    %81 = vmatpush1.msra.mxu0 0.0
    %82 = vmatprep.subr.mxu0 0.0
    %83 = vmatpush1.msra.mxu0 0.0
    %84 = vmatprep.subr.mxu0 0.0
    %85 = vmatpush1.msra.mxu0 0.0
    %86 = vmatprep.subr.mxu0 0.0
    %87 = vmatpush1.msra.mxu0 0.0
    %88 = vmatprep.subr.mxu0 0.0
    %89 = vmatpush1.msra.mxu0 0.0
    %90 = vmatprep.subr.mxu0 0.0
    %91 = vmatpush1.msra.mxu0 0.0
    %92 = vmatprep.subr.mxu0 0.0
    %93 = vmatpush1.msra.mxu0 0.0
    %94 = vmatprep.subr.mxu0 0.0
    %95 = vmatpush1.msra.mxu0 0.0
    %96 = vmatprep.subr.mxu0 0.0
    %97 = vmatpush1.msra.mxu0 0.0
    %98 = vmatprep.subr.mxu0 0.0
    %99 = vmatpush1.msra.mxu0 0.0
    %100 = vmatprep.subr.mxu0 0.0
    %101 = vmatpush1.msra.mxu0 0.0
    %102 = vmatprep.subr.mxu0 0.0
    %103 = vmatpush1.msra.mxu0 0.0
    %104 = vmatprep.subr.mxu0 0.0
    %105 = vmatpush1.msra.mxu0 0.0
    %106 = vmatprep.subr.mxu0 0.0
    %107 = vmatpush1.msra.mxu0 0.0
    %108 = vmatprep.subr.mxu0 0.0
    %109 = vmatpush1.msra.mxu0 0.0
    %110 = vmatprep.subr.mxu0 0.0
    %111 = vmatpush1.msra.mxu0 0.0
    %112 = vmatprep.subr.mxu0 0.0
    %113 = vmatpush1.msra.mxu0 0.0
    %114 = vmatprep.subr.mxu0 0.0
    %115 = vmatpush1.msra.mxu0 0.0
    %116 = vmatprep.subr.mxu0 0.0
    %117 = vmatpush1.msra.mxu0 0.0
    %118 = vmatprep.subr.mxu0 0.0
    %119 = vmatpush1.msra.mxu0 0.0
    %120 = vmatprep.subr.mxu0 0.0
    %121 = vmatpush1.msra.mxu0 0.0
    %122 = vmatprep.subr.mxu0 0.0
    %123 = vmatpush1.msra.mxu0 0.0
    %124 = vmatprep.subr.mxu0 0.0
    %125 = vmatpush1.msra.mxu0 0.0
    %126 = vmatprep.mubr.f32.mxu0 0.0
    %127 = vmatmul.mubr.f32.gmra.mrb[0].mxu0 %v47
    %v128 = vpop.f32.mrb[0].mxu0
    %v129 = vadd.f32 0.0, %v128
    %v130 = vpop.f32.mrb[0].mxu0
    %131 = vmatprep.mubr.f32.mxu0 0.0
    %132 = vmatmul.mubr.f32.gmra.mrb[0].mxu0 %v50
    %v133 = vpop.f32.mrb[0].mxu0
    %v134 = vadd.f32 0.0, %v133
    %v135 = vpop.f32.mrb[0].mxu0
    %136 = vmatprep.mubr.f32.mxu0 0.0
    %137 = vmatmul.mubr.f32.gmra.mrb[0].mxu0 %v53
    %v138 = vpop.f32.mrb[0].mxu0
    %v139 = vadd.f32 0.0, %v138
    %v140 = vpop.f32.mrb[0].mxu0
    %141 = vmatprep.mubr.f32.mxu0 0.0
    %142 = vmatmul.mubr.f32.gmra.mrb[0].mxu0 %v56
    %v143 = vpop.f32.mrb[0].mxu0
    %v144 = vadd.f32 0.0, %v143
    %v145 = vpop.f32.mrb[0].mxu0
    %146 = vdwg.mxu0
    %vm147 = vcmask 31744
    %v149 = vsel %vm147, %v35, 0
    %v152 = vsel %vm147, %v36, 0
    %v155 = vsel %vm147, %v37, 0
    %v158 = vsel %vm147, %v38, 0
    %vm160 = vcmask 1043456
    %v162 = vsel %vm160, %v39, 0
    %164 = vmatprep.subr.mxu0 0.0
    %165 = vmatpush1.msra.mxu0 %v162
    %166 = vmatprep.subr.mxu0 0.0
    %167 = vmatpush1.msra.mxu0 0.0
    %168 = vmatprep.subr.mxu0 0.0
    %169 = vmatpush1.msra.mxu0 0.0
    %170 = vmatprep.subr.mxu0 0.0
    %171 = vmatpush1.msra.mxu0 0.0
    %172 = vmatprep.subr.mxu0 0.0
    %173 = vmatpush1.msra.mxu0 0.0
    %174 = vmatprep.subr.mxu0 0.0
    %175 = vmatpush1.msra.mxu0 0.0
    %176 = vmatprep.subr.mxu0 0.0
    %177 = vmatpush1.msra.mxu0 0.0
    %178 = vmatprep.subr.mxu0 0.0
    %179 = vmatpush1.msra.mxu0 0.0
    %180 = vmatprep.subr.mxu0 0.0
    %181 = vmatpush1.msra.mxu0 0.0
    %182 = vmatprep.subr.mxu0 0.0
    %183 = vmatpush1.msra.mxu0 0.0
    %184 = vmatprep.subr.mxu0 0.0
    %185 = vmatpush1.msra.mxu0 0.0
    %186 = vmatprep.subr.mxu0 0.0
    %187 = vmatpush1.msra.mxu0 0.0
    %188 = vmatprep.subr.mxu0 0.0
    %189 = vmatpush1.msra.mxu0 0.0
    %190 = vmatprep.subr.mxu0 0.0
    %191 = vmatpush1.msra.mxu0 0.0
    %192 = vmatprep.subr.mxu0 0.0
    %193 = vmatpush1.msra.mxu0 0.0
    %194 = vmatprep.subr.mxu0 0.0
    %195 = vmatpush1.msra.mxu0 0.0
    %196 = vmatprep.subr.mxu0 0.0
    %197 = vmatpush1.msra.mxu0 0.0
    %198 = vmatprep.subr.mxu0 0.0
    %199 = vmatpush1.msra.mxu0 0.0
    %200 = vmatprep.subr.mxu0 0.0
    %201 = vmatpush1.msra.mxu0 0.0
    %202 = vmatprep.subr.mxu0 0.0
    %203 = vmatpush1.msra.mxu0 0.0
    %204 = vmatprep.subr.mxu0 0.0
    %205 = vmatpush1.msra.mxu0 0.0
    %206 = vmatprep.subr.mxu0 0.0
    %207 = vmatpush1.msra.mxu0 0.0
    %208 = vmatprep.subr.mxu0 0.0
    %209 = vmatpush1.msra.mxu0 0.0
    %210 = vmatprep.subr.mxu0 0.0
    %211 = vmatpush1.msra.mxu0 0.0
    %212 = vmatprep.subr.mxu0 0.0
    %213 = vmatpush1.msra.mxu0 0.0
    %214 = vmatprep.subr.mxu0 0.0
    %215 = vmatpush1.msra.mxu0 0.0
    %216 = vmatprep.subr.mxu0 0.0
    %217 = vmatpush1.msra.mxu0 0.0
    %218 = vmatprep.subr.mxu0 0.0
    %219 = vmatpush1.msra.mxu0 0.0
    %220 = vmatprep.subr.mxu0 0.0
    %221 = vmatpush1.msra.mxu0 0.0
    %222 = vmatprep.subr.mxu0 0.0
    %223 = vmatpush1.msra.mxu0 0.0
    %224 = vmatprep.subr.mxu0 0.0
    %225 = vmatpush1.msra.mxu0 0.0
    %226 = vmatprep.subr.mxu0 0.0
    %227 = vmatpush1.msra.mxu0 0.0
    %228 = vmatprep.mubr.f32.mxu0 0.0
    %229 = vmatmul.mubr.f32.gmra.mrb[0].mxu0 %v149
    %v230 = vpop.f32.mrb[0].mxu0
    %v231 = vadd.f32 %v129, %v230
    %v232 = vpop.f32.mrb[0].mxu0
    %233 = vmatprep.mubr.f32.mxu0 0.0
    %234 = vmatmul.mubr.f32.gmra.mrb[0].mxu0 %v152
    %v235 = vpop.f32.mrb[0].mxu0
    %v236 = vadd.f32 %v134, %v235
    %v237 = vpop.f32.mrb[0].mxu0
    %238 = vmatprep.mubr.f32.mxu0 0.0
    %239 = vmatmul.mubr.f32.gmra.mrb[0].mxu0 %v155
    %v240 = vpop.f32.mrb[0].mxu0
    %v241 = vadd.f32 %v139, %v240
    %v242 = vpop.f32.mrb[0].mxu0
    %243 = vmatprep.mubr.f32.mxu0 0.0
    %244 = vmatmul.mubr.f32.gmra.mrb[0].mxu0 %v158
    %v245 = vpop.f32.mrb[0].mxu0
    %v246 = vadd.f32 %v144, %v245
    %v247 = vpop.f32.mrb[0].mxu0
    %248 = vdwg.mxu0
    %v249 = vld [vmem:[%s4] sm:$0xff]
    %v250 = vld [vmem:[%s4 + $0x8] sm:$0xff]
    %v251 = vld [vmem:[%s4 + $0x10] sm:$0xff]
    %v252 = vld [vmem:[%s4 + $0x18] sm:$0xff]
    %254 = vset.pattern.permute.xlu0 0
    %255 = vperm.xlu0 %254, %v249
    %v256 = vpop.permute.xlu0 %255
    %259 = vset.pattern.permute.xlu0 0
    %260 = vperm.xlu0 %259, %v250
    %v261 = vpop.permute.xlu0 %260
    %264 = vset.pattern.permute.xlu0 0
    %265 = vperm.xlu0 %264, %v251
    %v266 = vpop.permute.xlu0 %265
    %269 = vset.pattern.permute.xlu0 0
    %270 = vperm.xlu0 %269, %v252
    %v271 = vpop.permute.xlu0 %270
    %v273 = vadd.f32 %v231, %v256
    %v274 = vadd.f32 %v236, %v261
    %v275 = vadd.f32 %v241, %v266
    %v276 = vadd.f32 %v246, %v271
    %v277 = vmax.f32 %v273, 0.0
    %v278 = vmax.f32 %v274, 0.0
    %v279 = vmax.f32 %v275, 0.0
    %v280 = vmax.f32 %v276, 0.0
    %v281 = vld [vmem:[%s5] sm:$0xff]
    %v282 = vld [vmem:[%s5 + $0x8] sm:$0xff]
    %v283 = vld [vmem:[%s5 + $0x10] sm:$0xff]
    %v284 = vld [vmem:[%s5 + $0x18] sm:$0xff]
    %v285 = vld [vmem:[%s6] sm:$0xff]
    %v286 = vld [vmem:[%s6 + $0x8] sm:$0xff]
    %v287 = vld [vmem:[%s6 + $0x10] sm:$0xff]
    %v288 = vld [vmem:[%s6 + $0x18] sm:$0xff]
    %290 = vset.pattern.permute.xlu0 0
    %291 = vperm.xlu0 %290, %v285
    %v292 = vpop.permute.xlu0 %291
    %295 = vset.pattern.permute.xlu0 0
    %296 = vperm.xlu0 %295, %v286
    %v297 = vpop.permute.xlu0 %296
    %300 = vset.pattern.permute.xlu0 0
    %301 = vperm.xlu0 %300, %v287
    %v302 = vpop.permute.xlu0 %301
    %305 = vset.pattern.permute.xlu0 0
    %306 = vperm.xlu0 %305, %v288
    %v307 = vpop.permute.xlu0 %306
    %vm309 = vcmask 261120
    %v311 = vsel %vm309, %v281, 0
    %v314 = vsel %vm309, %v282, 0
    %v317 = vsel %vm309, %v283, 0
    %v320 = vsel %vm309, %v284, 0
    %322 = vmatprep.subr.mxu0 0.0
    %323 = vmatpush1.msra.mxu0 %v277
    %324 = vmatprep.subr.mxu0 0.0
    %325 = vmatpush1.msra.mxu0 %v278
    %326 = vmatprep.subr.mxu0 0.0
    %327 = vmatpush1.msra.mxu0 %v279
    %328 = vmatprep.subr.mxu0 0.0
    %329 = vmatpush1.msra.mxu0 %v280
    %330 = vmatprep.subr.mxu0 0.0
    %331 = vmatpush1.msra.mxu0 0.0
    %332 = vmatprep.subr.mxu0 0.0
    %333 = vmatpush1.msra.mxu0 0.0
    %334 = vmatprep.subr.mxu0 0.0
    %335 = vmatpush1.msra.mxu0 0.0
    %336 = vmatprep.subr.mxu0 0.0
    %337 = vmatpush1.msra.mxu0 0.0
    %338 = vmatprep.subr.mxu0 0.0
    %339 = vmatpush1.msra.mxu0 0.0
    %340 = vmatprep.subr.mxu0 0.0
    %341 = vmatpush1.msra.mxu0 0.0
    %342 = vmatprep.subr.mxu0 0.0
    %343 = vmatpush1.msra.mxu0 0.0
    %344 = vmatprep.subr.mxu0 0.0
    %345 = vmatpush1.msra.mxu0 0.0
    %346 = vmatprep.subr.mxu0 0.0
    %347 = vmatpush1.msra.mxu0 0.0
    %348 = vmatprep.subr.mxu0 0.0
    %349 = vmatpush1.msra.mxu0 0.0
    %350 = vmatprep.subr.mxu0 0.0
    %351 = vmatpush1.msra.mxu0 0.0
    %352 = vmatprep.subr.mxu0 0.0
    %353 = vmatpush1.msra.mxu0 0.0
    %354 = vmatprep.subr.mxu0 0.0
    %355 = vmatpush1.msra.mxu0 0.0
    %356 = vmatprep.subr.mxu0 0.0
    %357 = vmatpush1.msra.mxu0 0.0
    %358 = vmatprep.subr.mxu0 0.0
    %359 = vmatpush1.msra.mxu0 0.0
    %360 = vmatprep.subr.mxu0 0.0
    %361 = vmatpush1.msra.mxu0 0.0
    %362 = vmatprep.subr.mxu0 0.0
    %363 = vmatpush1.msra.mxu0 0.0
    %364 = vmatprep.subr.mxu0 0.0
    %365 = vmatpush1.msra.mxu0 0.0
    %366 = vmatprep.subr.mxu0 0.0
    %367 = vmatpush1.msra.mxu0 0.0
    %368 = vmatprep.subr.mxu0 0.0
    %369 = vmatpush1.msra.mxu0 0.0
    %370 = vmatprep.subr.mxu0 0.0
    %371 = vmatpush1.msra.mxu0 0.0
    %372 = vmatprep.subr.mxu0 0.0
    %373 = vmatpush1.msra.mxu0 0.0
    %374 = vmatprep.subr.mxu0 0.0
    %375 = vmatpush1.msra.mxu0 0.0
    %376 = vmatprep.subr.mxu0 0.0
    %377 = vmatpush1.msra.mxu0 0.0
    %378 = vmatprep.subr.mxu0 0.0
    %379 = vmatpush1.msra.mxu0 0.0
    %380 = vmatprep.subr.mxu0 0.0
    %381 = vmatpush1.msra.mxu0 0.0
    %382 = vmatprep.subr.mxu0 0.0
    %383 = vmatpush1.msra.mxu0 0.0
    %384 = vmatprep.subr.mxu0 0.0
    %385 = vmatpush1.msra.mxu0 0.0
    %386 = vmatprep.mubr.f32.mxu0 0.0
    %387 = vmatmul.mubr.f32.gmra.mrb[0].mxu0 %v311
    %v388 = vpop.f32.mrb[0].mxu0
    %v389 = vadd.f32 %v292, %v388
    %v390 = vpop.f32.mrb[0].mxu0
    %391 = vmatprep.mubr.f32.mxu0 0.0
    %392 = vmatmul.mubr.f32.gmra.mrb[0].mxu0 %v314
    %v393 = vpop.f32.mrb[0].mxu0
    %v394 = vadd.f32 %v297, %v393
    %v395 = vpop.f32.mrb[0].mxu0
    %396 = vmatprep.mubr.f32.mxu0 0.0
    %397 = vmatmul.mubr.f32.gmra.mrb[0].mxu0 %v317
    %v398 = vpop.f32.mrb[0].mxu0
    %v399 = vadd.f32 %v302, %v398
    %v400 = vpop.f32.mrb[0].mxu0
    %401 = vmatprep.mubr.f32.mxu0 0.0
    %402 = vmatmul.mubr.f32.gmra.mrb[0].mxu0 %v320
    %v403 = vpop.f32.mrb[0].mxu0
    %v404 = vadd.f32 %v307, %v403
    %v405 = vpop.f32.mrb[0].mxu0
    %406 = vdwg.mxu0
    %v407 = vmax.f32 %v389, 0.0
    %v408 = vmax.f32 %v394, 0.0
    %v409 = vmax.f32 %v399, 0.0
    %v410 = vmax.f32 %v404, 0.0
    %v411 = vld [vmem:[%s7] sm:$0x1]
    %v412 = vld [vmem:[#allocation2] sm:$0x1]
    %414 = vset.pattern.permute.xlu0 0
    %415 = vperm.xlu0 %414, %v412
    %v416 = vpop.permute.xlu0 %415
    %v418 = vlaneseq
    %v419 = vshrl.u32 %v418, 7
    %v420 = vsub.s32 0, %v419
    %v421 = vrot.slane %v416, %v420
    %v423 = vsel %vm309, %v411, 0
    %425 = vmatprep.subr.mxu0 0.0
    %426 = vmatpush1.msra.mxu0 %v407
    %427 = vmatprep.subr.mxu0 0.0
    %428 = vmatpush1.msra.mxu0 %v408
    %429 = vmatprep.subr.mxu0 0.0
    %430 = vmatpush1.msra.mxu0 %v409
    %431 = vmatprep.subr.mxu0 0.0
    %432 = vmatpush1.msra.mxu0 %v410
    %433 = vmatprep.subr.mxu0 0.0
    %434 = vmatpush1.msra.mxu0 0.0
    %435 = vmatprep.subr.mxu0 0.0
    %436 = vmatpush1.msra.mxu0 0.0
    %437 = vmatprep.subr.mxu0 0.0
    %438 = vmatpush1.msra.mxu0 0.0
    %439 = vmatprep.subr.mxu0 0.0
    %440 = vmatpush1.msra.mxu0 0.0
    %441 = vmatprep.subr.mxu0 0.0
    %442 = vmatpush1.msra.mxu0 0.0
    %443 = vmatprep.subr.mxu0 0.0
    %444 = vmatpush1.msra.mxu0 0.0
    %445 = vmatprep.subr.mxu0 0.0
    %446 = vmatpush1.msra.mxu0 0.0
    %447 = vmatprep.subr.mxu0 0.0
    %448 = vmatpush1.msra.mxu0 0.0
    %449 = vmatprep.subr.mxu0 0.0
    %450 = vmatpush1.msra.mxu0 0.0
    %451 = vmatprep.subr.mxu0 0.0
    %452 = vmatpush1.msra.mxu0 0.0
    %453 = vmatprep.subr.mxu0 0.0
    %454 = vmatpush1.msra.mxu0 0.0
    %455 = vmatprep.subr.mxu0 0.0
    %456 = vmatpush1.msra.mxu0 0.0
    %457 = vmatprep.subr.mxu0 0.0
    %458 = vmatpush1.msra.mxu0 0.0
    %459 = vmatprep.subr.mxu0 0.0
    %460 = vmatpush1.msra.mxu0 0.0
    %461 = vmatprep.subr.mxu0 0.0
    %462 = vmatpush1.msra.mxu0 0.0
    %463 = vmatprep.subr.mxu0 0.0
    %464 = vmatpush1.msra.mxu0 0.0
    %465 = vmatprep.subr.mxu0 0.0
    %466 = vmatpush1.msra.mxu0 0.0
    %467 = vmatprep.subr.mxu0 0.0
    %468 = vmatpush1.msra.mxu0 0.0
    %469 = vmatprep.subr.mxu0 0.0
    %470 = vmatpush1.msra.mxu0 0.0
    %471 = vmatprep.subr.mxu0 0.0
    %472 = vmatpush1.msra.mxu0 0.0
    %473 = vmatprep.subr.mxu0 0.0
    %474 = vmatpush1.msra.mxu0 0.0
    %475 = vmatprep.subr.mxu0 0.0
    %476 = vmatpush1.msra.mxu0 0.0
    %477 = vmatprep.subr.mxu0 0.0
    %478 = vmatpush1.msra.mxu0 0.0
    %479 = vmatprep.subr.mxu0 0.0
    %480 = vmatpush1.msra.mxu0 0.0
    %481 = vmatprep.subr.mxu0 0.0
    %482 = vmatpush1.msra.mxu0 0.0
    %483 = vmatprep.subr.mxu0 0.0
    %484 = vmatpush1.msra.mxu0 0.0
    %485 = vmatprep.subr.mxu0 0.0
    %486 = vmatpush1.msra.mxu0 0.0
    %487 = vmatprep.subr.mxu0 0.0
    %488 = vmatpush1.msra.mxu0 0.0
    %489 = vmatprep.mubr.f32.mxu0 0.0
    %490 = vmatmul.mubr.f32.gmra.mrb[0].mxu0 %v423
    %v491 = vpop.f32.mrb[0].mxu0
    %v492 = vadd.f32 %v421, %v491
    %v493 = vpop.f32.mrb[0].mxu0
    %494 = vdwg.mxu0
    %vm495 = vcmask 122880
    %496 = vst.msk [vmem:[#allocation3] sm:$0x1] %vm495, %v492
    // Predicated region
    $region38: #{tpu_custom_call.1} parent=1 // pred_check
      _
    $region39: #{tpu_custom_call.1} parent=1 // pred_check_branch
      %498 = sbr.rel (0) target = $region41
    $region40: #{tpu_custom_call.1} parent=1 // pred_region
      %s500 = ssub.s32 16, 16
      %501 = vsyncadd [#allocation4], %s500
      %s503 = sshll.u32 [#allocation3], 4
      %s504 = int_to_ptr.vmem [resolvable:$true] %s503
      %506 = dma.vmem_to_hbm [thread:$0]  %s504, 16, %s9, [#allocation4]
    $region41: #{tpu_custom_call.1} parent=1 // pred_fallthru
      _
    // Predicated region
    $region42: #{tpu_custom_call.1} parent=1 // pred_check
      _
    $region43: #{tpu_custom_call.1} parent=1 // pred_check_branch
      %508 = sbr.rel (0) target = $region45
    $region44: #{tpu_custom_call.1} parent=1 // pred_region
      %509 = dma.done [#allocation4], 16
    $region45: #{tpu_custom_call.1} parent=1 // pred_fallthru
      _
    %510 = vsyncpa [#allocation4], 1

</llo_original>
